<compile_context>
chip_gen: v6e
topology: v6e:2x2x1
jax: 0.10.0
libtpu: 0.0.40
codegen_flags: <defaults>
</compile_context>

<pallas_src>
import numpy as np
import jax
import jax.numpy as jnp
from jax import lax
from jax.experimental import pallas as pl
from jax.experimental.pallas import tpu as pltpu

# ---- STFT hyper-parameters (small, consistent with the module semantics) ----
FILTER_LENGTH = 16                         # n_fft
HOP_LENGTH = 4
WIN_LENGTH = 16
CUTOFF = FILTER_LENGTH // 2 + 1            # 9 rfft bins

B = 2
T = 256                                    # samples per batch element
TP = T + FILTER_LENGTH                     # reflect-padded length
N_FRAMES = (TP - FILTER_LENGTH) // HOP_LENGTH + 1          # 65
T_OUT = HOP_LENGTH * (N_FRAMES - 1) + FILTER_LENGTH        # 272 (pre-crop)

C_PAD = 64                                 # rfft bins zero-padded to half a vreg of lanes
CC = 2 * C_PAD                             # [real | imag] slabs -> 128 lanes (lane-dense)
ROWS_BLK = 128                             # frame rows per grid step (MXU M granule)


# ----------------------------- Pallas kernel ---------------------------------
def _denoiser_kernel(frames_ref, fwd_ref, bias_ref, strength_ref, inv_ref, out_ref):
    # frames_ref  : (ROWS_BLK, L)  bf16  one block of STFT frames
    # fwd_ref     : (L, CC)        bf16  [real | imag] windowed Fourier basis
    # bias_ref    : (1, CC)        f32   bias magnitude spectrum (duplicated halves)
    # strength_ref: (1,)           f32   SMEM scalar (no recompile when it changes)
    # inv_ref     : (CC, L)        bf16  [real ; imag] windowed pseudo-inverse basis
    # out_ref     : (ROWS_BLK, L)  f32   per-frame reconstruction (pre overlap-add)

    # forward STFT (strided conv1d) as one bf16 MXU matmul, f32 accumulation
    spec = jnp.dot(frames_ref[...], fwd_ref[...],
                   preferred_element_type=jnp.float32)               # (ROWS_BLK, CC)

    # mag^2 per bin, shared across the real/imag lane halves via an XLU lane roll
    sq = spec * spec
    mag_sq = sq + pltpu.roll(sq, shift=C_PAD, axis=1)                 # re^2 + im^2
    inv_mag = lax.rsqrt(mag_sq + 1e-12)                               # single EUP op

    # denoise: clamp(mag - bias*strength, 0) applied as a ratio on (real, imag)
    ratio = jnp.maximum(1.0 - bias_ref[...] * strength_ref[0] * inv_mag, 0.0)
    rec = (spec * ratio).astype(jnp.bfloat16)

    # inverse STFT (conv_transpose1d, per-frame part) as one bf16 MXU matmul
    out_ref[...] = jnp.dot(rec, inv_ref[...],
                           preferred_element_type=jnp.float32)        # (ROWS_BLK, L)


# ------------------------------- wrapper --------------------------------------
def denoiser_forward(audio, params, strength=0.1):
    """audio: (B, T) float32  ->  denoised audio (B, 1, T), like the torch module."""
    fwd_cat, inv_cat, bias_row, norm_row = params
    b, t = audio.shape
    half = FILTER_LENGTH // 2
    n_frames = t // HOP_LENGTH + 1
    t_out = HOP_LENGTH * (n_frames - 1) + FILTER_LENGTH
    rows = b * n_frames
    rows_pad = ((rows + ROWS_BLK - 1) // ROWS_BLK) * ROWS_BLK

    # reflect padding + framing (pure data movement -> XLA glue)
    padded = jnp.pad(audio.astype(jnp.float32), ((0, 0), (half, half)), mode='reflect')
    idx = (np.arange(n_frames)[:, None] * HOP_LENGTH
           + np.arange(FILTER_LENGTH)[None, :])                        # (N, L) static
    frames = padded[:, idx].reshape(rows, FILTER_LENGTH)
    frames = jnp.pad(frames, ((0, rows_pad - rows), (0, 0))).astype(jnp.bfloat16)

    frame_out = pl.pallas_call(
        _denoiser_kernel,
        out_shape=jax.ShapeDtypeStruct((rows_pad, FILTER_LENGTH), jnp.float32),
        grid=(rows_pad // ROWS_BLK,),
        in_specs=[
            pl.BlockSpec((ROWS_BLK, FILTER_LENGTH), lambda i: (i, 0)),   # frames
            pl.BlockSpec((FILTER_LENGTH, CC), lambda i: (0, 0)),         # fwd basis
            pl.BlockSpec((1, CC), lambda i: (0, 0)),                     # bias spectrum
            pl.BlockSpec(memory_space=pltpu.MemorySpace.SMEM),           # strength
            pl.BlockSpec((CC, FILTER_LENGTH), lambda i: (0, 0)),         # inv basis
        ],
        out_specs=pl.BlockSpec((ROWS_BLK, FILTER_LENGTH), lambda i: (i, 0)),
        compiler_params=pltpu.CompilerParams(
            dimension_semantics=("parallel",)),
    )(frames, fwd_cat, bias_row,
      jnp.reshape(jnp.asarray(strength, jnp.float32), (1,)), inv_cat)

    # overlap-add (L//H shifted adds), window-sum normalisation, edge crop.
    # TODO(synk): overlap-add / normalisation stay as XLA glue; with hop = L/4 this is
    # four vector adds on (B, T_OUT) and not worth an in-kernel scatter.
    frame_out = frame_out[:rows].reshape(b, n_frames, FILTER_LENGTH)
    taps = FILTER_LENGTH // HOP_LENGTH
    chunks = frame_out.reshape(b, n_frames, taps, HOP_LENGTH)
    span = n_frames * HOP_LENGTH
    out = jnp.zeros((b, t_out), jnp.float32)
    for k in range(taps):
        seg = chunks[:, :, k, :].reshape(b, span)
        out = out.at[:, k * HOP_LENGTH:k * HOP_LENGTH + span].add(seg)
    out = out * norm_row[None, :]
    return out[:, half:half + t][:, None, :]                          # (B, 1, T)


# ---------------------------- host-side setup ---------------------------------
def _build_stft_bases():
    """Windowed Fourier basis, pseudo-inverse basis and window-sum normalisation."""
    L, H, C = FILTER_LENGTH, HOP_LENGTH, CUTOFF
    fourier = np.fft.fft(np.eye(L))
    basis = np.vstack([np.real(fourier[:C]), np.imag(fourier[:C])])     # (2C, L)
    # periodic hann window (scipy get_window('hann', L, fftbins=True))
    window = 0.5 - 0.5 * np.cos(2.0 * np.pi * np.arange(L) / L)
    scale = float(L) / float(H)
    fwd_basis = (basis * window[None, :]).astype(np.float32)            # (2C, L)
    inv_basis = (np.linalg.pinv(scale * basis).T * window[None, :]).astype(np.float32)
    # librosa window_sumsquare normalisation folded with the hop-ratio scale
    wsum = np.zeros(T_OUT, np.float64)
    for n in range(N_FRAMES):
        wsum[n * H:n * H + L] += window ** 2
    tiny = np.finfo(np.float32).tiny
    norm = (np.where(wsum > tiny, 1.0 / wsum, 1.0) * scale).astype(np.float32)
    return fwd_basis, inv_basis, norm


def _build_bias_spec(key, fwd_basis):
    """Synthetic replacement for the vocoder(zero-mel) bias spectrum (column 0).

    # TODO(synk): the real module runs a WaveGlow vocoder on a zero mel in __init__;
    # here we use a small deterministic signal and take its first STFT frame.
    """
    L, C = FILTER_LENGTH, CUTOFF
    bias_audio = 0.01 * np.asarray(jax.random.normal(key, (4 * L,), dtype=jnp.float32))
    padded = np.pad(bias_audio, (L // 2, L // 2), mode='reflect')
    frame0 = padded[:L]
    re = fwd_basis[:C] @ frame0
    im = fwd_basis[C:] @ frame0
    return np.sqrt(re * re + im * im).astype(np.float32)                # (C,) >= 0


def _pack_params(fwd_basis, inv_basis, bias_spec, norm):
    """Pack the tiny (2C, L) bases into lane-dense, 128-wide bf16 matmul operands."""
    C = CUTOFF
    fwd_cat = np.zeros((FILTER_LENGTH, CC), np.float32)
    fwd_cat[:, :C] = fwd_basis[:C].T                                    # real bins
    fwd_cat[:, C_PAD:C_PAD + C] = fwd_basis[C:].T                       # imag bins
    inv_cat = np.zeros((CC, FILTER_LENGTH), np.float32)
    inv_cat[:C, :] = inv_basis[:C]
    inv_cat[C_PAD:C_PAD + C, :] = inv_basis[C:]
    bias_row = np.zeros((1, CC), np.float32)                            # duplicated halves
    bias_row[0, :C] = bias_spec
    bias_row[0, C_PAD:C_PAD + C] = bias_spec
    return (jnp.asarray(fwd_cat, dtype=jnp.bfloat16),
            jnp.asarray(inv_cat, dtype=jnp.bfloat16),
            jnp.asarray(bias_row, dtype=jnp.float32),
            jnp.asarray(norm, dtype=jnp.float32))


# ------------------------------ reference -------------------------------------
def reference_forward_np(audio_np, fwd_basis, inv_basis, bias_spec, strength=0.1):
    """Independent float64 numpy reference mirroring the torch STFT math."""
    L, H, C, N = FILTER_LENGTH, HOP_LENGTH, CUTOFF, N_FRAMES
    audio = audio_np.astype(np.float64)
    padded = np.pad(audio, ((0, 0), (L // 2, L // 2)), mode='reflect')
    idx = np.arange(N)[:, None] * H + np.arange(L)[None, :]
    frames = padded[:, idx]                                             # (B, N, L)
    fwd = np.einsum('bnl,cl->bcn', frames, fwd_basis.astype(np.float64))
    real, imag = fwd[:, :C], fwd[:, C:]
    mag = np.sqrt(real ** 2 + imag ** 2)
    phase = np.arctan2(imag, real)
    den = np.maximum(mag - bias_spec.astype(np.float64)[None, :, None] * strength, 0.0)
    rec = np.concatenate([den * np.cos(phase), den * np.sin(phase)], axis=1)
    frame_out = np.einsum('bcn,cl->bnl', rec, inv_basis.astype(np.float64))
    out = np.zeros((audio.shape[0], T_OUT))
    for n in range(N):
        out[:, n * H:n * H + L] += frame_out[:, n]
    window = 0.5 - 0.5 * np.cos(2.0 * np.pi * np.arange(L) / L)
    wsum = np.zeros(T_OUT)
    for n in range(N):
        wsum[n * H:n * H + L] += window ** 2
    nz = wsum > np.finfo(np.float32).tiny
    out[:, nz] /= wsum[nz]
    out *= float(L) / H
    return out[:, L // 2:L // 2 + T]


if __name__ == "__main__":
    key = jax.random.PRNGKey(0)
    k_audio, k_bias = jax.random.split(key)

    fwd_basis, inv_basis, norm = _build_stft_bases()
    bias_spec = _build_bias_spec(k_bias, fwd_basis)                     # (C,)
    params = _pack_params(fwd_basis, inv_basis, bias_spec, norm)

    audio = jax.random.normal(k_audio, (B, T), dtype=jnp.float32)

    out = jax.jit(denoiser_forward)(audio, params, 0.1)
    out = jax.block_until_ready(out)
    assert out.shape == (B, 1, T), out.shape

    ref = reference_forward_np(np.asarray(audio), fwd_basis, inv_basis, bias_spec, 0.1)
    got = np.asarray(out[:, 0, :], dtype=np.float64)
    if not np.allclose(got, ref, rtol=5e-2, atol=5e-2):
        raise AssertionError(
            f"mismatch vs reference, max abs err {float(np.max(np.abs(got - ref)))}")
    print("KERNEL_OK")
</pallas_src>

<mosaic_0001>
module attributes {stable_mosaic.version = 11 : i64} {
  func.func @_denoiser_kernel(%arg0: i32, %arg1: memref<128x16xbf16, #tpu.memory_space<vmem>>, %arg2: memref<16x128xbf16, #tpu.memory_space<vmem>>, %arg3: memref<1x128xf32, #tpu.memory_space<vmem>>, %arg4: memref<1xf32, #tpu.memory_space<smem>>, %arg5: memref<128x16xbf16, #tpu.memory_space<vmem>>, %arg6: memref<128x16xf32, #tpu.memory_space<vmem>>) attributes {dimension_semantics = [#tpu.dimension_semantics<parallel>], iteration_bounds = array<i64: 2>, scalar_prefetch = 0 : i64, scratch_operands = 0 : i64, tpu.core_type = #tpu.core_type<tc>, window_params = [{transform_indices = @transform_0, window_bounds = array<i64: 128, 16>}, {pipeline_mode = #tpu.pipeline_mode<synchronous>, transform_indices = @transform_1, window_bounds = array<i64: 16, 128>}, {pipeline_mode = #tpu.pipeline_mode<synchronous>, transform_indices = @transform_2, window_bounds = array<i64: 1, 128>}, {transform_indices = @transform_3, window_bounds = array<i64: 1>}, {pipeline_mode = #tpu.pipeline_mode<synchronous>, transform_indices = @transform_4, window_bounds = array<i64: 128, 16>}, {transform_indices = @transform_5, window_bounds = array<i64: 128, 16>}]} {
    %c0 = arith.constant 0 : index
    %c0_0 = arith.constant 0 : index
    %0 = vector.load %arg1[%c0, %c0_0] : memref<128x16xbf16, #tpu.memory_space<vmem>>, vector<128x16xbf16>
    %c0_1 = arith.constant 0 : index
    %c0_2 = arith.constant 0 : index
    %1 = vector.load %arg2[%c0_1, %c0_2] : memref<16x128xbf16, #tpu.memory_space<vmem>>, vector<16x128xbf16>
    %cst = arith.constant dense<0.000000e+00> : vector<128x128xf32>
    %2 = tpu.matmul %0, %1, %cst {dimension_numbers = #tpu.dot_dimension_numbers<[1], [0], [0], [1], [0, 0, 1, 1], [], []>} : vector<128x16xbf16>, vector<16x128xbf16>, vector<128x128xf32> -> vector<128x128xf32>
    %3 = arith.mulf %2, %2 : vector<128x128xf32>
    %c64_i32 = arith.constant 64 : i32
    %4 = tpu.dynamic_rotate %3 by %c64_i32 dim 1 : vector<128x128xf32>, i32 -> vector<128x128xf32>
    %5 = arith.addf %3, %4 : vector<128x128xf32>
    %cst_3 = arith.constant 9.99999996E-13 : f32
    %6 = vector.broadcast %cst_3 : f32 to vector<128x128xf32>
    %7 = arith.addf %5, %6 : vector<128x128xf32>
    %8 = math.rsqrt %7 : vector<128x128xf32>
    %c0_4 = arith.constant 0 : index
    %c0_5 = arith.constant 0 : index
    %9 = vector.load %arg3[%c0_4, %c0_5] : memref<1x128xf32, #tpu.memory_space<vmem>>, vector<1x128xf32>
    %c0_6 = arith.constant 0 : index
    %10 = memref.load %arg4[%c0_6] : memref<1xf32, #tpu.memory_space<smem>>
    %11 = vector.broadcast %10 : f32 to vector<1x128xf32>
    %12 = arith.mulf %9, %11 : vector<1x128xf32>
    %13 = vector.broadcast %12 : vector<1x128xf32> to vector<128x128xf32>
    %14 = arith.mulf %13, %8 : vector<128x128xf32>
    %cst_7 = arith.constant 1.000000e+00 : f32
    %15 = vector.broadcast %cst_7 : f32 to vector<128x128xf32>
    %16 = arith.subf %15, %14 : vector<128x128xf32>
    %cst_8 = arith.constant 0.000000e+00 : f32
    %17 = vector.broadcast %cst_8 : f32 to vector<128x128xf32>
    %18 = arith.maximumf %16, %17 : vector<128x128xf32>
    %19 = arith.mulf %2, %18 : vector<128x128xf32>
    %20 = arith.truncf %19 : vector<128x128xf32> to vector<128x128xbf16>
    %c0_9 = arith.constant 0 : index
    %c0_10 = arith.constant 0 : index
    %21 = vector.load %arg5[%c0_9, %c0_10] : memref<128x16xbf16, #tpu.memory_space<vmem>>, vector<128x16xbf16>
    %cst_11 = arith.constant dense<0.000000e+00> : vector<128x16xf32>
    %22 = tpu.matmul %20, %21, %cst_11 {dimension_numbers = #tpu.dot_dimension_numbers<[1], [0], [0], [1], [0, 0, 1, 1], [], []>} : vector<128x128xbf16>, vector<128x16xbf16>, vector<128x16xf32> -> vector<128x16xf32>
    %c0_12 = arith.constant 0 : index
    %c0_13 = arith.constant 0 : index
    %23 = vector.load %arg6[%c0_12, %c0_13] : memref<128x16xf32, #tpu.memory_space<vmem>>, vector<128x16xf32>
    tpu.vector_store %arg6[%c0_12, %c0_13], %22 {strides = array<i32>} : memref<128x16xf32, #tpu.memory_space<vmem>>, vector<128x16xf32>,
    return
  }
  func.func @transform_0(%arg0: i32) -> (i32, i32) {
    %c0_i32 = arith.constant 0 : i32
    %c0_i32_0 = arith.constant 0 : i32
    return %arg0, %c0_i32 : i32, i32
  }
  func.func @transform_1(%arg0: i32) -> (i32, i32) {
    %c0_i32 = arith.constant 0 : i32
    %c0_i32_0 = arith.constant 0 : i32
    %c0_i32_1 = arith.constant 0 : i32
    return %c0_i32, %c0_i32_0 : i32, i32
  }
  func.func @transform_2(%arg0: i32) -> (i32, i32) {
    %c0_i32 = arith.constant 0 : i32
    %c0_i32_0 = arith.constant 0 : i32
    %c0_i32_1 = arith.constant 0 : i32
    return %c0_i32, %c0_i32_0 : i32, i32
  }
  func.func @transform_3(%arg0: i32) -> i32 {
    %c0_i32 = arith.constant 0 : i32
    %c0_i32_0 = arith.constant 0 : i32
    return %c0_i32 : i32
  }
  func.func @transform_4(%arg0: i32) -> (i32, i32) {
    %c0_i32 = arith.constant 0 : i32
    %c0_i32_0 = arith.constant 0 : i32
    %c0_i32_1 = arith.constant 0 : i32
    return %c0_i32, %c0_i32_0 : i32, i32
  }
  func.func @transform_5(%arg0: i32) -> (i32, i32) {
    %c0_i32 = arith.constant 0 : i32
    %c0_i32_0 = arith.constant 0 : i32
    return %arg0, %c0_i32 : i32, i32
  }
}

</mosaic_0001>

<llo_original>
// kernel: denoiser_forward.1
$region0: #{denoiser_forward.1}
  #allocation0 [shape = 'u32[]', space=smem, size = 0x4, offset = 0x4, fixed_abs, tag = 'smem constant byte address 0x4 - core index']
  #allocation1 [shape = 'u32[144,128]{1,0:T(1,128)}', space=vmem, size = 0x12000, scoped, tag = 'internal scratch']
  #allocation2 [shape = 'f32[1]{0:T(128)S(6)}', space=smem, size = 0x200, scoped, tag = 'scoped memory for denoiser_forward.1']
  %s0 = inlined_call_operand.vmem [shape: bf16[256,16], index: 0, kind: input, shape index: {}]
  %s1 = inlined_call_operand.vmem [shape: bf16[16,128], index: 1, kind: input, shape index: {}]
  %s2 = inlined_call_operand.vmem [shape: f32[1,128], index: 2, kind: input, shape index: {}]
  %s3 = inlined_call_operand.<no memory space> [shape: f32[1], index: 3, kind: input, shape index: {}]
  %s4 = inlined_call_operand.vmem [shape: bf16[128,16], index: 4, kind: input, shape index: {}]
  %s5 = inlined_call_operand.vmem [shape: f32[256,16], index: 5, kind: output, shape index: {}]
  %s6 = sld [smem:[#allocation0]]
  $region53: #{denoiser_forward.1} parent=0
    _
  %s8 = ssub.s32 1, %s6
  %s9 = scalar_select 0, %s8, %s6
  %10 = sst [smem:[#allocation2]] %s3
  loop: start=0, step=1, limit=4
  $region2: #{denoiser_forward.1} parent=0 // loop_pre_header
    _
  $region3: #{denoiser_forward.1} parent=0 // loop_header
    %s12 = sphi 0, %s16
    %p13 = scmp.ge.s32.totalorder %s12, 4
    %s22 = sphi 0, %s24
    %s25 = sphi 0, %s22
    %s26 = sphi 0, %s25
    %s42 = sphi 0, %s26
    %s46 = sphi 0, %s46
    %s48 = sphi 0, %s46
    %s49 = sphi 0, %s48
    %s63 = sphi 0, %s49
    %s67 = sphi 0, %s67
    %s69 = sphi 0, %s67
    %s70 = sphi 0, %s69
    %s84 = sphi 0, %s70
    %s88 = sphi 0, %s88
    %s90 = sphi 0, %s88
    %s91 = sphi 0, %s90
    %s105 = sphi 0, %s91
    %s109 = sphi 0, %s109
    %s111 = sphi 0, %s109
    %s112 = sphi 0, %s111
    %s126 = sphi 0, %s112
    %s132 = sphi 0, %s134
    %s135 = sphi 0, %s132
    %s136 = sphi 0, %s135
    %s152 = sphi 0, %s136
  $region4: #{denoiser_forward.1} parent=0 // loop_header_branch
    %15 = sbr.rel (%p13) target = $region8
  $region5: #{denoiser_forward.1} parent=0 // loop_body
    %s17 = ssub.s32 %s12, 1
    %s18 = ssub.s32 %s12, 2
    %s19 = sadd.s32 %s12, 1
    %s20 = ssub.s32 %s12, %s19
    %p21 = scmp.eq.s32.totalorder %s20, 0
    %s23 = sadd.s32 %s22, 1
    %s24 = scalar_select %p21, %s22, %s23
    %p27 = pneg %p21
    %p28 = scmp.eq.s32.totalorder %s12, 1
    %p29 = por %p27, %p28
    %p30 = scmp.ne.s32.totalorder %s22, %s25
    %p31 = scmp.eq.s32.totalorder %s12, 0
    %p32 = por %p30, %p31
    %p33 = scmp.ne.s32.totalorder %s22, %s25
    %p34 = scmp.eq.s32.totalorder %s17, 1
    %p35 = por %p33, %p34
    %p36 = scmp.ne.s32.totalorder %s25, %s26
    %p37 = scmp.eq.s32.totalorder %s17, 0
    %p38 = por %p36, %p37
    %p39 = scmp.ne.s32.totalorder %s25, %s26
    %p40 = scmp.eq.s32.totalorder %s18, 1
    %p41 = por %p39, %p40
    %p43 = scmp.ne.s32.totalorder %s26, %s42
    %p44 = scmp.eq.s32.totalorder %s18, 0
    %p45 = por %p43, %p44
    %s47 = sadd.s32 %s46, 1
    %p50 = scmp.eq.s32.totalorder %s12, 1
    %p51 = scmp.ne.s32.totalorder %s46, %s48
    %p52 = scmp.eq.s32.totalorder %s12, 0
    %p53 = por %p51, %p52
    %p54 = scmp.ne.s32.totalorder %s46, %s48
    %p55 = scmp.eq.s32.totalorder %s17, 1
    %p56 = por %p54, %p55
    %p57 = scmp.ne.s32.totalorder %s48, %s49
    %p58 = scmp.eq.s32.totalorder %s17, 0
    %p59 = por %p57, %p58
    %p60 = scmp.ne.s32.totalorder %s48, %s49
    %p61 = scmp.eq.s32.totalorder %s18, 1
    %p62 = por %p60, %p61
    %p64 = scmp.ne.s32.totalorder %s49, %s63
    %p65 = scmp.eq.s32.totalorder %s18, 0
    %p66 = por %p64, %p65
    %s68 = sadd.s32 %s67, 1
    %p71 = scmp.eq.s32.totalorder %s12, 1
    %p72 = scmp.ne.s32.totalorder %s67, %s69
    %p73 = scmp.eq.s32.totalorder %s12, 0
    %p74 = por %p72, %p73
    %p75 = scmp.ne.s32.totalorder %s67, %s69
    %p76 = scmp.eq.s32.totalorder %s17, 1
    %p77 = por %p75, %p76
    %p78 = scmp.ne.s32.totalorder %s69, %s70
    %p79 = scmp.eq.s32.totalorder %s17, 0
    %p80 = por %p78, %p79
    %p81 = scmp.ne.s32.totalorder %s69, %s70
    %p82 = scmp.eq.s32.totalorder %s18, 1
    %p83 = por %p81, %p82
    %p85 = scmp.ne.s32.totalorder %s70, %s84
    %p86 = scmp.eq.s32.totalorder %s18, 0
    %p87 = por %p85, %p86
    %s89 = sadd.s32 %s88, 1
    %p92 = scmp.eq.s32.totalorder %s12, 1
    %p93 = scmp.ne.s32.totalorder %s88, %s90
    %p94 = scmp.eq.s32.totalorder %s12, 0
    %p95 = por %p93, %p94
    %p96 = scmp.ne.s32.totalorder %s88, %s90
    %p97 = scmp.eq.s32.totalorder %s17, 1
    %p98 = por %p96, %p97
    %p99 = scmp.ne.s32.totalorder %s90, %s91
    %p100 = scmp.eq.s32.totalorder %s17, 0
    %p101 = por %p99, %p100
    %p102 = scmp.ne.s32.totalorder %s90, %s91
    %p103 = scmp.eq.s32.totalorder %s18, 1
    %p104 = por %p102, %p103
    %p106 = scmp.ne.s32.totalorder %s91, %s105
    %p107 = scmp.eq.s32.totalorder %s18, 0
    %p108 = por %p106, %p107
    %s110 = sadd.s32 %s109, 1
    %p113 = scmp.eq.s32.totalorder %s12, 1
    %p114 = scmp.ne.s32.totalorder %s109, %s111
    %p115 = scmp.eq.s32.totalorder %s12, 0
    %p116 = por %p114, %p115
    %p117 = scmp.ne.s32.totalorder %s109, %s111
    %p118 = scmp.eq.s32.totalorder %s17, 1
    %p119 = por %p117, %p118
    %p120 = scmp.ne.s32.totalorder %s111, %s112
    %p121 = scmp.eq.s32.totalorder %s17, 0
    %p122 = por %p120, %p121
    %p123 = scmp.ne.s32.totalorder %s111, %s112
    %p124 = scmp.eq.s32.totalorder %s18, 1
    %p125 = por %p123, %p124
    %p127 = scmp.ne.s32.totalorder %s112, %s126
    %p128 = scmp.eq.s32.totalorder %s18, 0
    %p129 = por %p127, %p128
    %s130 = ssub.s32 %s12, %s19
    %p131 = scmp.eq.s32.totalorder %s130, 0
    %s133 = sadd.s32 %s132, 1
    %s134 = scalar_select %p131, %s132, %s133
    %p137 = pneg %p131
    %p138 = scmp.eq.s32.totalorder %s12, 1
    %p139 = por %p137, %p138
    %p140 = scmp.ne.s32.totalorder %s132, %s135
    %p141 = scmp.eq.s32.totalorder %s12, 0
    %p142 = por %p140, %p141
    %p143 = scmp.ne.s32.totalorder %s132, %s135
    %p144 = scmp.eq.s32.totalorder %s17, 1
    %p145 = por %p143, %p144
    %p146 = scmp.ne.s32.totalorder %s135, %s136
    %p147 = scmp.eq.s32.totalorder %s17, 0
    %p148 = por %p146, %p147
    %p149 = scmp.ne.s32.totalorder %s135, %s136
    %p150 = scmp.eq.s32.totalorder %s18, 1
    %p151 = por %p149, %p150
    %p153 = scmp.ne.s32.totalorder %s136, %s152
    %p154 = scmp.eq.s32.totalorder %s18, 0
    %p155 = por %p153, %p154
    %p156 = scmp.le.s32.totalorder 1, %s12
    %p157 = scmp.lt.s32.totalorder %s12, 3
    %p158 = pnand %p156, %p157
    %p159 = pneg %p158
    // Predicated region
    $region9: #{denoiser_forward.1} parent=5 // pred_check
      _
    $region10: #{denoiser_forward.1} parent=5 // pred_check_branch
      %161 = sbr.rel (%p158) target = $region12
    $region11: #{denoiser_forward.1} parent=5 // pred_region
      %s162 = ssub.s32 %s12, 1
      // Predicated region
      $region13: #{denoiser_forward.1} parent=11 // pred_check
        %p163 = pneg %p59
      $region14: #{denoiser_forward.1} parent=11 // pred_check_branch
        %165 = sbr.rel (%p163) target = $region16
      $region15: #{denoiser_forward.1} parent=11 // pred_region
        _
      $region16: #{denoiser_forward.1} parent=11 // pred_fallthru
        _
      // Predicated region
      $region17: #{denoiser_forward.1} parent=11 // pred_check
        %p166 = pneg %p80
      $region18: #{denoiser_forward.1} parent=11 // pred_check_branch
        %168 = sbr.rel (%p166) target = $region20
      $region19: #{denoiser_forward.1} parent=11 // pred_region
        _
      $region20: #{denoiser_forward.1} parent=11 // pred_fallthru
        _
      // Predicated region
      $region21: #{denoiser_forward.1} parent=11 // pred_check
        %p169 = pneg %p101
      $region22: #{denoiser_forward.1} parent=11 // pred_check_branch
        %171 = sbr.rel (%p169) target = $region24
      $region23: #{denoiser_forward.1} parent=11 // pred_region
        _
      $region24: #{denoiser_forward.1} parent=11 // pred_fallthru
        _
      // Predicated region
      $region25: #{denoiser_forward.1} parent=11 // pred_check
        %p172 = pneg %p122
      $region26: #{denoiser_forward.1} parent=11 // pred_check_branch
        %174 = sbr.rel (%p172) target = $region28
      $region27: #{denoiser_forward.1} parent=11 // pred_region
        _
      $region28: #{denoiser_forward.1} parent=11 // pred_fallthru
        _
    $region12: #{denoiser_forward.1} parent=5 // pred_fallthru
      _
    %p175 = scmp.lt.s32.totalorder %s12, 2
    // Predicated region
    $region29: #{denoiser_forward.1} parent=5 // pred_check
      %p176 = pneg %p175
    $region30: #{denoiser_forward.1} parent=5 // pred_check_branch
      %178 = sbr.rel (%p176) target = $region32
    $region31: #{denoiser_forward.1} parent=5 // pred_region
      // Predicated region
      $region33: #{denoiser_forward.1} parent=31 // pred_check
        %p179 = pneg %p32
      $region34: #{denoiser_forward.1} parent=31 // pred_check_branch
        %181 = sbr.rel (%p179) target = $region36
      $region35: #{denoiser_forward.1} parent=31 // pred_region
        %s182 = smul.u32 16, %s12
        %p183 = scmp.lt.s32.totalorder %s182, 31
        %s184 = scalar_select %p183, %s182, 31
        %s185 = smul.addr %s184, 4
        %s186 = scalar_lea.vmem %s0, %s185
        %s187 = smul.u32 16, %s12
      $region36: #{denoiser_forward.1} parent=31 // pred_fallthru
        _
    $region32: #{denoiser_forward.1} parent=5 // pred_fallthru
      _
    %p188 = scmp.le.s32.totalorder 1, %s12
    %p189 = scmp.lt.s32.totalorder %s12, 3
    %p190 = pnand %p188, %p189
    %p191 = pneg %p190
    // Predicated region
    $region37: #{denoiser_forward.1} parent=5 // pred_check
      _
    $region38: #{denoiser_forward.1} parent=5 // pred_check_branch
      %193 = sbr.rel (%p190) target = $region40
    $region39: #{denoiser_forward.1} parent=5 // pred_region
      %s194 = ssub.s32 %s12, 1
      %s195 = smul.u32 16, %s17
      %p196 = scmp.lt.s32.totalorder %s195, 31
      %s197 = scalar_select %p196, %s195, 31
      %s198 = smul.addr %s197, 4
      %s199 = scalar_lea.vmem %s0, %s198
      %p200 = pneg %p38
      %p201 = pneg %p35
      %p202 = pneg %p59
      %p203 = pneg %p56
      %p204 = pneg %p80
      %p205 = pneg %p77
      %p206 = pneg %p101
      %p207 = pneg %p98
      %p208 = pneg %p122
      %p209 = pneg %p119
      %p210 = pneg %p148
      %p211 = pneg %p145
      %s212 = smul.u32 16, %s17
      %p213 = scmp.lt.s32.totalorder %s212, 31
      %s214 = scalar_select %p213, %s212, 31
      %s215 = smul.addr %s214, 8
      %s216 = scalar_lea.vmem %s5, %s215
      %s217 = smul.u32 16, %s17
      %p218 = scmp.lt.s32.totalorder %s217, 31
      %s219 = scalar_select %p218, %s217, 31
      %s220 = smul.addr %s219, 4
      %s221 = scalar_lea.vmem %s0, %s220
      %s222 = smul.u32 16, %s17
      %s223 = smul.u32 16, %s17
      %p224 = scmp.lt.s32.totalorder %s223, 31
      %s225 = scalar_select %p224, %s223, 31
      %s226 = smul.addr %s225, 8
      %s227 = scalar_lea.vmem %s5, %s226
      %s228 = smul.u32 16, %s17
      %v230 = vld [vmem:[%s221] sm:$0xf]
      %v231 = vld [vmem:[%s221 + $0x4] sm:$0xf]
      %v232 = vld [vmem:[%s221 + $0x8] sm:$0xf]
      %v233 = vld [vmem:[%s221 + $0xc] sm:$0xf]
      %v234 = vld [vmem:[%s221 + $0x10] sm:$0xf]
      %v235 = vld [vmem:[%s221 + $0x14] sm:$0xf]
      %v236 = vld [vmem:[%s221 + $0x18] sm:$0xf]
      %v237 = vld [vmem:[%s221 + $0x1c] sm:$0xf]
      %v238 = vld [vmem:[%s221 + $0x20] sm:$0xf]
      %v239 = vld [vmem:[%s221 + $0x24] sm:$0xf]
      %v240 = vld [vmem:[%s221 + $0x28] sm:$0xf]
      %v241 = vld [vmem:[%s221 + $0x2c] sm:$0xf]
      %v242 = vld [vmem:[%s221 + $0x30] sm:$0xf]
      %v243 = vld [vmem:[%s221 + $0x34] sm:$0xf]
      %v244 = vld [vmem:[%s221 + $0x38] sm:$0xf]
      %v245 = vld [vmem:[%s221 + $0x3c] sm:$0xf]
      %v246 = vld [vmem:[%s1] sm:$0xf]
      %v247 = vld [vmem:[%s1 + $0x4] sm:$0xf]
      %v264 = vunpack.c.l.b16 %v230
      %v265 = vunpack.c.l.b16 %v231
      %v266 = vunpack.c.l.b16 %v232
      %v267 = vunpack.c.l.b16 %v233
      %v268 = vunpack.c.l.b16 %v234
      %v269 = vunpack.c.l.b16 %v235
      %v270 = vunpack.c.l.b16 %v236
      %v271 = vunpack.c.l.b16 %v237
      %v272 = vunpack.c.l.b16 %v238
      %v273 = vunpack.c.l.b16 %v239
      %v274 = vunpack.c.l.b16 %v240
      %v275 = vunpack.c.l.b16 %v241
      %v276 = vunpack.c.l.b16 %v242
      %v277 = vunpack.c.l.b16 %v243
      %v278 = vunpack.c.l.b16 %v244
      %v279 = vunpack.c.l.b16 %v245
      %v280 = vpack.c.b16 %v265, %v264
      %v281 = vpack.c.b16 %v267, %v266
      %v282 = vpack.c.b16 %v269, %v268
      %v283 = vpack.c.b16 %v271, %v270
      %v284 = vpack.c.b16 %v273, %v272
      %v285 = vpack.c.b16 %v275, %v274
      %v286 = vpack.c.b16 %v277, %v276
      %v287 = vpack.c.b16 %v279, %v278
      %v290 = vunpack.c.l.b16 %v246
      %v291 = vunpack.c.l.b16 %v247
      %v292 = vpack.c.b16 %v291, %v290
      %vm294 = vcmask 130048
      %v296 = vsel %vm294, %v280, 0
      %v299 = vsel %vm294, %v281, 0
      %v302 = vsel %vm294, %v282, 0
      %v305 = vsel %vm294, %v283, 0
      %v308 = vsel %vm294, %v284, 0
      %v311 = vsel %vm294, %v285, 0
      %v314 = vsel %vm294, %v286, 0
      %v317 = vsel %vm294, %v287, 0
      %319 = vmatprep.subr.bf16.mxu0 0
      %320 = vmatpush1.bf16.msra.mxu0 0
      %321 = vmatprep.subr.bf16.mxu0 0
      %322 = vmatpush1.bf16.msra.mxu0 0
      %323 = vmatprep.subr.bf16.mxu0 0
      %324 = vmatpush1.bf16.msra.mxu0 0
      %325 = vmatprep.subr.bf16.mxu0 0
      %326 = vmatpush1.bf16.msra.mxu0 0
      %327 = vmatprep.subr.bf16.mxu0 0
      %328 = vmatpush1.bf16.msra.mxu0 0
      %329 = vmatprep.subr.bf16.mxu0 0
      %330 = vmatpush1.bf16.msra.mxu0 0
      %331 = vmatprep.subr.bf16.mxu0 0
      %332 = vmatpush1.bf16.msra.mxu0 0
      %333 = vmatprep.subr.bf16.mxu0 0
      %334 = vmatpush1.bf16.msra.mxu0 %v292
      %335 = vmatprep.subr.bf16.mxu0 0
      %336 = vmatpush2.bf16.msra.mxu0 0
      %337 = vmatprep.subr.bf16.mxu0 0
      %338 = vmatpush2.bf16.msra.mxu0 0
      %339 = vmatprep.subr.bf16.mxu0 0
      %340 = vmatpush2.bf16.msra.mxu0 0
      %341 = vmatprep.subr.bf16.mxu0 0
      %342 = vmatpush2.bf16.msra.mxu0 0
      %343 = vmatprep.subr.bf16.mxu0 0
      %344 = vmatpush2.bf16.msra.mxu0 0
      %345 = vmatprep.subr.bf16.mxu0 0
      %346 = vmatpush2.bf16.msra.mxu0 0
      %347 = vmatprep.subr.bf16.mxu0 0
      %348 = vmatpush2.bf16.msra.mxu0 0
      %349 = vmatprep.subr.bf16.mxu0 0
      %350 = vmatpush2.bf16.msra.mxu0 0
      %351 = vmatprep.mubr.bf16.mxu0 0
      %352 = vmatmul.mubr.bf16.gmra.mxu0 %v296
      %v353 = vpop.f32.mrf.mxu0
      %v354 = vadd.f32 0.0, %v353
      %v355 = vpop.f32.mrf.mxu0
      %v356 = vpop.f32.mrf.mxu0
      %v357 = vadd.f32 0.0, %v356
      %v358 = vpop.f32.mrf.mxu0
      %359 = vmatprep.mubr.bf16.mxu0 0
      %360 = vmatmul.mubr.bf16.gmra.mxu0 %v299
      %v361 = vpop.f32.mrf.mxu0
      %v362 = vadd.f32 0.0, %v361
      %v363 = vpop.f32.mrf.mxu0
      %v364 = vpop.f32.mrf.mxu0
      %v365 = vadd.f32 0.0, %v364
      %v366 = vpop.f32.mrf.mxu0
      %367 = vmatprep.mubr.bf16.mxu0 0
      %368 = vmatmul.mubr.bf16.gmra.mxu0 %v302
      %v369 = vpop.f32.mrf.mxu0
      %v370 = vadd.f32 0.0, %v369
      %v371 = vpop.f32.mrf.mxu0
      %v372 = vpop.f32.mrf.mxu0
      %v373 = vadd.f32 0.0, %v372
      %v374 = vpop.f32.mrf.mxu0
      %375 = vmatprep.mubr.bf16.mxu0 0
      %376 = vmatmul.mubr.bf16.gmra.mxu0 %v305
      %v377 = vpop.f32.mrf.mxu0
      %v378 = vadd.f32 0.0, %v377
      %v379 = vpop.f32.mrf.mxu0
      %v380 = vpop.f32.mrf.mxu0
      %v381 = vadd.f32 0.0, %v380
      %v382 = vpop.f32.mrf.mxu0
      %383 = vmatprep.mubr.bf16.mxu0 0
      %384 = vmatmul.mubr.bf16.gmra.mxu0 %v308
      %v385 = vpop.f32.mrf.mxu0
      %v386 = vadd.f32 0.0, %v385
      %v387 = vpop.f32.mrf.mxu0
      %v388 = vpop.f32.mrf.mxu0
      %v389 = vadd.f32 0.0, %v388
      %v390 = vpop.f32.mrf.mxu0
      %391 = vmatprep.mubr.bf16.mxu0 0
      %392 = vmatmul.mubr.bf16.gmra.mxu0 %v311
      %v393 = vpop.f32.mrf.mxu0
      %v394 = vadd.f32 0.0, %v393
      %v395 = vpop.f32.mrf.mxu0
      %v396 = vpop.f32.mrf.mxu0
      %v397 = vadd.f32 0.0, %v396
      %v398 = vpop.f32.mrf.mxu0
      %399 = vmatprep.mubr.bf16.mxu0 0
      %400 = vmatmul.mubr.bf16.gmra.mxu0 %v314
      %v401 = vpop.f32.mrf.mxu0
      %v402 = vadd.f32 0.0, %v401
      %v403 = vpop.f32.mrf.mxu0
      %v404 = vpop.f32.mrf.mxu0
      %v405 = vadd.f32 0.0, %v404
      %v406 = vpop.f32.mrf.mxu0
      %407 = vmatprep.mubr.bf16.mxu0 0
      %408 = vmatmul.mubr.bf16.gmra.mxu0 %v317
      %v409 = vpop.f32.mrf.mxu0
      %v410 = vadd.f32 0.0, %v409
      %v411 = vpop.f32.mrf.mxu0
      %v412 = vpop.f32.mrf.mxu0
      %v413 = vadd.f32 0.0, %v412
      %v414 = vpop.f32.mrf.mxu0
      %415 = vdwg.mxu0
      %v416 = vmul.f32 %v354, %v354
      %v417 = vmul.f32 %v357, %v357
      %v418 = vmul.f32 %v362, %v362
      %v419 = vmul.f32 %v365, %v365
      %v420 = vmul.f32 %v370, %v370
      %v421 = vmul.f32 %v373, %v373
      %v422 = vmul.f32 %v378, %v378
      %v423 = vmul.f32 %v381, %v381
      %v424 = vmul.f32 %v386, %v386
      %v425 = vmul.f32 %v389, %v389
      %v426 = vmul.f32 %v394, %v394
      %v427 = vmul.f32 %v397, %v397
      %v428 = vmul.f32 %v402, %v402
      %v429 = vmul.f32 %v405, %v405
      %v430 = vmul.f32 %v410, %v410
      %v431 = vmul.f32 %v413, %v413
      %432 = vrot.lane.b32.xlu0 %v416, 64
      %v433 = vpop.permute.xlu0 %432
      %434 = vrot.lane.b32.xlu0 %v417, 64
      %v435 = vpop.permute.xlu0 %434
      %436 = vrot.lane.b32.xlu0 %v418, 64
      %v437 = vpop.permute.xlu0 %436
      %438 = vrot.lane.b32.xlu0 %v419, 64
      %v439 = vpop.permute.xlu0 %438
      %440 = vrot.lane.b32.xlu0 %v420, 64
      %v441 = vpop.permute.xlu0 %440
      %442 = vrot.lane.b32.xlu0 %v421, 64
      %v443 = vpop.permute.xlu0 %442
      %444 = vrot.lane.b32.xlu0 %v422, 64
      %v445 = vpop.permute.xlu0 %444
      %446 = vrot.lane.b32.xlu0 %v423, 64
      %v447 = vpop.permute.xlu0 %446
      %448 = vrot.lane.b32.xlu0 %v424, 64
      %v449 = vpop.permute.xlu0 %448
      %450 = vrot.lane.b32.xlu0 %v425, 64
      %v451 = vpop.permute.xlu0 %450
      %452 = vrot.lane.b32.xlu0 %v426, 64
      %v453 = vpop.permute.xlu0 %452
      %454 = vrot.lane.b32.xlu0 %v427, 64
      %v455 = vpop.permute.xlu0 %454
      %456 = vrot.lane.b32.xlu0 %v428, 64
      %v457 = vpop.permute.xlu0 %456
      %458 = vrot.lane.b32.xlu0 %v429, 64
      %v459 = vpop.permute.xlu0 %458
      %460 = vrot.lane.b32.xlu0 %v430, 64
      %v461 = vpop.permute.xlu0 %460
      %462 = vrot.lane.b32.xlu0 %v431, 64
      %v463 = vpop.permute.xlu0 %462
      %v464 = vadd.f32 %v416, %v433
      %v465 = vadd.f32 %v417, %v435
      %v466 = vadd.f32 %v418, %v437
      %v467 = vadd.f32 %v419, %v439
      %v468 = vadd.f32 %v420, %v441
      %v469 = vadd.f32 %v421, %v443
      %v470 = vadd.f32 %v422, %v445
      %v471 = vadd.f32 %v423, %v447
      %v472 = vadd.f32 %v424, %v449
      %v473 = vadd.f32 %v425, %v451
      %v474 = vadd.f32 %v426, %v453
      %v475 = vadd.f32 %v427, %v455
      %v476 = vadd.f32 %v428, %v457
      %v477 = vadd.f32 %v429, %v459
      %v478 = vadd.f32 %v430, %v461
      %v479 = vadd.f32 %v431, %v463
      %v480 = vadd.f32 %v464, 1e-12
      %v481 = vadd.f32 %v465, 1e-12
      %v482 = vadd.f32 %v466, 1e-12
      %v483 = vadd.f32 %v467, 1e-12
      %v484 = vadd.f32 %v468, 1e-12
      %v485 = vadd.f32 %v469, 1e-12
      %v486 = vadd.f32 %v470, 1e-12
      %v487 = vadd.f32 %v471, 1e-12
      %v488 = vadd.f32 %v472, 1e-12
      %v489 = vadd.f32 %v473, 1e-12
      %v490 = vadd.f32 %v474, 1e-12
      %v491 = vadd.f32 %v475, 1e-12
      %v492 = vadd.f32 %v476, 1e-12
      %v493 = vadd.f32 %v477, 1e-12
      %v494 = vadd.f32 %v478, 1e-12
      %v495 = vadd.f32 %v479, 1e-12
      %v496 = vrsqrt.pop %v480
      %v497 = vrsqrt.pop %v481
      %v498 = vrsqrt.pop %v482
      %v499 = vrsqrt.pop %v483
      %v500 = vrsqrt.pop %v484
      %v501 = vrsqrt.pop %v485
      %v502 = vrsqrt.pop %v486
      %v503 = vrsqrt.pop %v487
      %v504 = vrsqrt.pop %v488
      %v505 = vrsqrt.pop %v489
      %v506 = vrsqrt.pop %v490
      %v507 = vrsqrt.pop %v491
      %v508 = vrsqrt.pop %v492
      %v509 = vrsqrt.pop %v493
      %v510 = vrsqrt.pop %v494
      %v511 = vrsqrt.pop %v495
      %v512 = vld [vmem:[%s2] sm:$0x1]
      %s513 = sld [smem:[#allocation2]]
      %v514 = vstv %s513
      %v515 = vmul.f32 %v512, %v514
      %v517 = vlaneseq
      %v518 = vshrl.u32 %v517, 7
      %v519 = vsub.s32 0, %v518
      %v520 = vrot.slane %v515, %v519
      %v522 = vmul.f32 %v520, %v496
      %v523 = vmul.f32 %v520, %v497
      %v524 = vmul.f32 %v520, %v498
      %v525 = vmul.f32 %v520, %v499
      %v526 = vmul.f32 %v520, %v500
      %v527 = vmul.f32 %v520, %v501
      %v528 = vmul.f32 %v520, %v502
      %v529 = vmul.f32 %v520, %v503
      %v530 = vmul.f32 %v520, %v504
      %v531 = vmul.f32 %v520, %v505
      %v532 = vmul.f32 %v520, %v506
      %v533 = vmul.f32 %v520, %v507
      %v534 = vmul.f32 %v520, %v508
      %v535 = vmul.f32 %v520, %v509
      %v536 = vmul.f32 %v520, %v510
      %v537 = vmul.f32 %v520, %v511
      %v538 = vsub.f32 1.0, %v522
      %v539 = vsub.f32 1.0, %v523
      %v540 = vsub.f32 1.0, %v524
      %v541 = vsub.f32 1.0, %v525
      %v542 = vsub.f32 1.0, %v526
      %v543 = vsub.f32 1.0, %v527
      %v544 = vsub.f32 1.0, %v528
      %v545 = vsub.f32 1.0, %v529
      %v546 = vsub.f32 1.0, %v530
      %v547 = vsub.f32 1.0, %v531
      %v548 = vsub.f32 1.0, %v532
      %v549 = vsub.f32 1.0, %v533
      %v550 = vsub.f32 1.0, %v534
      %v551 = vsub.f32 1.0, %v535
      %v552 = vsub.f32 1.0, %v536
      %v553 = vsub.f32 1.0, %v537
      %v554 = vmax.f32 %v538, 0.0
      %v555 = vmax.f32 %v539, 0.0
      %v556 = vmax.f32 %v540, 0.0
      %v557 = vmax.f32 %v541, 0.0
      %v558 = vmax.f32 %v542, 0.0
      %v559 = vmax.f32 %v543, 0.0
      %v560 = vmax.f32 %v544, 0.0
      %v561 = vmax.f32 %v545, 0.0
      %v562 = vmax.f32 %v546, 0.0
      %v563 = vmax.f32 %v547, 0.0
      %v564 = vmax.f32 %v548, 0.0
      %v565 = vmax.f32 %v549, 0.0
      %v566 = vmax.f32 %v550, 0.0
      %v567 = vmax.f32 %v551, 0.0
      %v568 = vmax.f32 %v552, 0.0
      %v569 = vmax.f32 %v553, 0.0
      %v570 = vmul.f32 %v354, %v554
      %v571 = vmul.f32 %v357, %v555
      %v572 = vmul.f32 %v362, %v556
      %v573 = vmul.f32 %v365, %v557
      %v574 = vmul.f32 %v370, %v558
      %v575 = vmul.f32 %v373, %v559
      %v576 = vmul.f32 %v378, %v560
      %v577 = vmul.f32 %v381, %v561
      %v578 = vmul.f32 %v386, %v562
      %v579 = vmul.f32 %v389, %v563
      %v580 = vmul.f32 %v394, %v564
      %v581 = vmul.f32 %v397, %v565
      %v582 = vmul.f32 %v402, %v566
      %v583 = vmul.f32 %v405, %v567
      %v584 = vmul.f32 %v410, %v568
      %v585 = vmul.f32 %v413, %v569
      %v586 = vpack.c.bf16 %v571, %v570
      %v587 = vpack.c.bf16 %v573, %v572
      %v588 = vpack.c.bf16 %v575, %v574
      %v589 = vpack.c.bf16 %v577, %v576
      %v590 = vpack.c.bf16 %v579, %v578
      %v591 = vpack.c.bf16 %v581, %v580
      %v592 = vpack.c.bf16 %v583, %v582
      %v593 = vpack.c.bf16 %v585, %v584
      %v594 = vld [vmem:[%s4] sm:$0xf]
      %v595 = vld [vmem:[%s4 + $0x4] sm:$0xf]
      %v596 = vld [vmem:[%s4 + $0x8] sm:$0xf]
      %v597 = vld [vmem:[%s4 + $0xc] sm:$0xf]
      %v598 = vld [vmem:[%s4 + $0x10] sm:$0xf]
      %v599 = vld [vmem:[%s4 + $0x14] sm:$0xf]
      %v600 = vld [vmem:[%s4 + $0x18] sm:$0xf]
      %v601 = vld [vmem:[%s4 + $0x1c] sm:$0xf]
      %v602 = vld [vmem:[%s4 + $0x20] sm:$0xf]
      %v603 = vld [vmem:[%s4 + $0x24] sm:$0xf]
      %v604 = vld [vmem:[%s4 + $0x28] sm:$0xf]
      %v605 = vld [vmem:[%s4 + $0x2c] sm:$0xf]
      %v606 = vld [vmem:[%s4 + $0x30] sm:$0xf]
      %v607 = vld [vmem:[%s4 + $0x34] sm:$0xf]
      %v608 = vld [vmem:[%s4 + $0x38] sm:$0xf]
      %v609 = vld [vmem:[%s4 + $0x3c] sm:$0xf]
      %v626 = vunpack.c.l.b16 %v594
      %v627 = vunpack.c.l.b16 %v595
      %v628 = vunpack.c.l.b16 %v596
      %v629 = vunpack.c.l.b16 %v597
      %v630 = vunpack.c.l.b16 %v598
      %v631 = vunpack.c.l.b16 %v599
      %v632 = vunpack.c.l.b16 %v600
      %v633 = vunpack.c.l.b16 %v601
      %v634 = vunpack.c.l.b16 %v602
      %v635 = vunpack.c.l.b16 %v603
      %v636 = vunpack.c.l.b16 %v604
      %v637 = vunpack.c.l.b16 %v605
      %v638 = vunpack.c.l.b16 %v606
      %v639 = vunpack.c.l.b16 %v607
      %v640 = vunpack.c.l.b16 %v608
      %v641 = vunpack.c.l.b16 %v609
      %v642 = vpack.c.b16 %v627, %v626
      %v643 = vpack.c.b16 %v629, %v628
      %v644 = vpack.c.b16 %v631, %v630
      %v645 = vpack.c.b16 %v633, %v632
      %v646 = vpack.c.b16 %v635, %v634
      %v647 = vpack.c.b16 %v637, %v636
      %v648 = vpack.c.b16 %v639, %v638
      %v649 = vpack.c.b16 %v641, %v640
      %658 = vmatprep.subr.bf16.mxu0 0
      %659 = vmatpush1.bf16.msra.mxu0 %v649
      %660 = vmatprep.subr.bf16.mxu0 0
      %661 = vmatpush1.bf16.msra.mxu0 %v648
      %662 = vmatprep.subr.bf16.mxu0 0
      %663 = vmatpush1.bf16.msra.mxu0 %v647
      %664 = vmatprep.subr.bf16.mxu0 0
      %665 = vmatpush1.bf16.msra.mxu0 %v646
      %666 = vmatprep.subr.bf16.mxu0 0
      %667 = vmatpush1.bf16.msra.mxu0 %v645
      %668 = vmatprep.subr.bf16.mxu0 0
      %669 = vmatpush1.bf16.msra.mxu0 %v644
      %670 = vmatprep.subr.bf16.mxu0 0
      %671 = vmatpush1.bf16.msra.mxu0 %v643
      %672 = vmatprep.subr.bf16.mxu0 0
      %673 = vmatpush1.bf16.msra.mxu0 %v642
      %674 = vmatprep.subr.bf16.mxu0 0
      %675 = vmatpush2.bf16.msra.mxu0 0
      %676 = vmatprep.subr.bf16.mxu0 0
      %677 = vmatpush2.bf16.msra.mxu0 0
      %678 = vmatprep.subr.bf16.mxu0 0
      %679 = vmatpush2.bf16.msra.mxu0 0
      %680 = vmatprep.subr.bf16.mxu0 0
      %681 = vmatpush2.bf16.msra.mxu0 0
      %682 = vmatprep.subr.bf16.mxu0 0
      %683 = vmatpush2.bf16.msra.mxu0 0
      %684 = vmatprep.subr.bf16.mxu0 0
      %685 = vmatpush2.bf16.msra.mxu0 0
      %686 = vmatprep.subr.bf16.mxu0 0
      %687 = vmatpush2.bf16.msra.mxu0 0
      %688 = vmatprep.subr.bf16.mxu0 0
      %689 = vmatpush2.bf16.msra.mxu0 0
      %690 = vmatprep.mubr.bf16.mxu0 0
      %691 = vmatmul.mubr.bf16.gmra.mxu0 %v586
      %v692 = vpop.f32.mrf.mxu0
      %v693 = vadd.f32 0.0, %v692
      %v694 = vpop.f32.mrf.mxu0
      %v695 = vpop.f32.mrf.mxu0
      %v696 = vadd.f32 0.0, %v695
      %v697 = vpop.f32.mrf.mxu0
      %698 = vmatprep.mubr.bf16.mxu0 0
      %699 = vmatmul.mubr.bf16.gmra.mxu0 %v587
      %v700 = vpop.f32.mrf.mxu0
      %v701 = vadd.f32 0.0, %v700
      %v702 = vpop.f32.mrf.mxu0
      %v703 = vpop.f32.mrf.mxu0
      %v704 = vadd.f32 0.0, %v703
      %v705 = vpop.f32.mrf.mxu0
      %706 = vmatprep.mubr.bf16.mxu0 0
      %707 = vmatmul.mubr.bf16.gmra.mxu0 %v588
      %v708 = vpop.f32.mrf.mxu0
      %v709 = vadd.f32 0.0, %v708
      %v710 = vpop.f32.mrf.mxu0
      %v711 = vpop.f32.mrf.mxu0
      %v712 = vadd.f32 0.0, %v711
      %v713 = vpop.f32.mrf.mxu0
      %714 = vmatprep.mubr.bf16.mxu0 0
      %715 = vmatmul.mubr.bf16.gmra.mxu0 %v589
      %v716 = vpop.f32.mrf.mxu0
      %v717 = vadd.f32 0.0, %v716
      %v718 = vpop.f32.mrf.mxu0
      %v719 = vpop.f32.mrf.mxu0
      %v720 = vadd.f32 0.0, %v719
      %v721 = vpop.f32.mrf.mxu0
      %722 = vmatprep.mubr.bf16.mxu0 0
      %723 = vmatmul.mubr.bf16.gmra.mxu0 %v590
      %v724 = vpop.f32.mrf.mxu0
      %v725 = vadd.f32 0.0, %v724
      %v726 = vpop.f32.mrf.mxu0
      %v727 = vpop.f32.mrf.mxu0
      %v728 = vadd.f32 0.0, %v727
      %v729 = vpop.f32.mrf.mxu0
      %730 = vmatprep.mubr.bf16.mxu0 0
      %731 = vmatmul.mubr.bf16.gmra.mxu0 %v591
      %v732 = vpop.f32.mrf.mxu0
      %v733 = vadd.f32 0.0, %v732
      %v734 = vpop.f32.mrf.mxu0
      %v735 = vpop.f32.mrf.mxu0
      %v736 = vadd.f32 0.0, %v735
      %v737 = vpop.f32.mrf.mxu0
      %738 = vmatprep.mubr.bf16.mxu0 0
      %739 = vmatmul.mubr.bf16.gmra.mxu0 %v592
      %v740 = vpop.f32.mrf.mxu0
      %v741 = vadd.f32 0.0, %v740
      %v742 = vpop.f32.mrf.mxu0
      %v743 = vpop.f32.mrf.mxu0
      %v744 = vadd.f32 0.0, %v743
      %v745 = vpop.f32.mrf.mxu0
      %746 = vmatprep.mubr.bf16.mxu0 0
      %747 = vmatmul.mubr.bf16.gmra.mxu0 %v593
      %v748 = vpop.f32.mrf.mxu0
      %v749 = vadd.f32 0.0, %v748
      %v750 = vpop.f32.mrf.mxu0
      %v751 = vpop.f32.mrf.mxu0
      %v752 = vadd.f32 0.0, %v751
      %v753 = vpop.f32.mrf.mxu0
      %754 = vdwg.mxu0
      %755 = vst.msk [vmem:[%s227] sm:$0xff] %vm294, %v693
      %756 = vst.msk [vmem:[%s227 + $0x8] sm:$0xff] %vm294, %v696
      %757 = vst.msk [vmem:[%s227 + $0x10] sm:$0xff] %vm294, %v701
      %758 = vst.msk [vmem:[%s227 + $0x18] sm:$0xff] %vm294, %v704
      %759 = vst.msk [vmem:[%s227 + $0x20] sm:$0xff] %vm294, %v709
      %760 = vst.msk [vmem:[%s227 + $0x28] sm:$0xff] %vm294, %v712
      %761 = vst.msk [vmem:[%s227 + $0x30] sm:$0xff] %vm294, %v717
      %762 = vst.msk [vmem:[%s227 + $0x38] sm:$0xff] %vm294, %v720
      %763 = vst.msk [vmem:[%s227 + $0x40] sm:$0xff] %vm294, %v725
      %764 = vst.msk [vmem:[%s227 + $0x48] sm:$0xff] %vm294, %v728
      %765 = vst.msk [vmem:[%s227 + $0x50] sm:$0xff] %vm294, %v733
      %766 = vst.msk [vmem:[%s227 + $0x58] sm:$0xff] %vm294, %v736
      %767 = vst.msk [vmem:[%s227 + $0x60] sm:$0xff] %vm294, %v741
      %768 = vst.msk [vmem:[%s227 + $0x68] sm:$0xff] %vm294, %v744
      %769 = vst.msk [vmem:[%s227 + $0x70] sm:$0xff] %vm294, %v749
      %770 = vst.msk [vmem:[%s227 + $0x78] sm:$0xff] %vm294, %v752
      %s771 = smul.u32 16, %s17
      %p772 = scmp.lt.s32.totalorder %s771, 31
      %s773 = scalar_select %p772, %s771, 31
      %s774 = smul.addr %s773, 8
      %s775 = scalar_lea.vmem %s5, %s774
      // Predicated region
      $region41: #{denoiser_forward.1} parent=39 // pred_check
        %p776 = pneg %p145
      $region42: #{denoiser_forward.1} parent=39 // pred_check_branch
        %778 = sbr.rel (%p776) target = $region44
      $region43: #{denoiser_forward.1} parent=39 // pred_region
        %s779 = smul.u32 16, %s17
      $region44: #{denoiser_forward.1} parent=39 // pred_fallthru
        _
    $region40: #{denoiser_forward.1} parent=5 // pred_fallthru
      _
    %p780 = scmp.le.s32.totalorder 2, %s12
    // Predicated region
    $region45: #{denoiser_forward.1} parent=5 // pred_check
      %p781 = pneg %p780
    $region46: #{denoiser_forward.1} parent=5 // pred_check_branch
      %783 = sbr.rel (%p781) target = $region48
    $region47: #{denoiser_forward.1} parent=5 // pred_region
      %s784 = ssub.s32 %s12, 2
      // Predicated region
      $region49: #{denoiser_forward.1} parent=47 // pred_check
        %p785 = pneg %p151
      $region50: #{denoiser_forward.1} parent=47 // pred_check_branch
        %787 = sbr.rel (%p785) target = $region52
      $region51: #{denoiser_forward.1} parent=47 // pred_region
        %s788 = smul.u32 16, %s18
        %p789 = scmp.lt.s32.totalorder %s788, 31
        %s790 = scalar_select %p789, %s788, 31
        %s791 = smul.addr %s790, 8
        %s792 = scalar_lea.vmem %s5, %s791
      $region52: #{denoiser_forward.1} parent=47 // pred_fallthru
        _
    $region48: #{denoiser_forward.1} parent=5 // pred_fallthru
      _
  $region6: #{denoiser_forward.1} parent=0 // loop_footer
    %s16 = sadd.s32 1, %s12
  $region7: #{denoiser_forward.1} parent=0 // loop_footer_branch
    %11 = sbr.rel target = $region3
  $region8: #{denoiser_forward.1} parent=0 // loop_exit
    _

</llo_original>
